<compile_context>
chip_gen: v5e
topology: v5e:2x2
jax: 0.10.0
libtpu: 0.0.40
codegen_flags: <defaults>
</compile_context>

<pallas_src>
import functools

import jax
import jax.numpy as jnp
from jax import lax
from jax.experimental import pallas as pl
from jax.experimental.pallas import tpu as pltpu


def _ce_label_smooth_kernel(logits_ref, targets_ref, partial_ref, *,
                            num_classes, epsilon, n_valid, block_n):
    i = pl.program_id(0)

    x = logits_ref[...].astype(jnp.float32)            # (block_n, C), f32 compute
    t = targets_ref[...]                                # (block_n, 1) int32

    # numerically-stable log-sum-exp pieces along the class (lane) axis
    row_max = jnp.max(x, axis=1, keepdims=True)         # (block_n, 1)
    shifted = x - row_max                                # (block_n, C)
    lse = jnp.log(jnp.sum(jnp.exp(shifted), axis=1, keepdims=True))   # (block_n, 1)

    # shifted logit at the target class, via iota-compare masked row-reduce
    col = lax.broadcasted_iota(jnp.int32, x.shape, 1)    # (block_n, C)
    tgt_shifted = jnp.sum(jnp.where(col == t, shifted, 0.0), axis=1, keepdims=True)
    row_sum = jnp.sum(shifted, axis=1, keepdims=True)    # (block_n, 1)

    # per-row smoothed cross entropy (no one_hot / smoothed tensors materialized)
    per_row = ((1.0 - epsilon) * (lse - tgt_shifted)
               + (epsilon / num_classes) * (jnp.float32(num_classes) * lse - row_sum))

    # mask rows past the true batch size (remainder tile reads unspecified data)
    rows = i * block_n + lax.broadcasted_iota(jnp.int32, per_row.shape, 0)
    per_row = jnp.where(rows < n_valid, per_row, 0.0)

    # lane-dense partial write: one (1, 128) block per grid step
    partial = jnp.sum(per_row)
    partial_ref[...] = jnp.broadcast_to(partial, partial_ref.shape).astype(jnp.float32)


def cross_entropy_label_smooth(logits, targets, *, num_classes, epsilon, tile_n=512):
    """logits: (N, C) float (f32 or bf16); targets: (N,) int class ids. Returns scalar f32."""
    n, c = logits.shape
    assert c == num_classes
    targets2d = targets.astype(jnp.int32).reshape(n, 1)

    # sublane granularity for the logits dtype (bf16 packs 16 rows per vreg)
    sub = 16 if logits.dtype == jnp.bfloat16 else 8

    if n <= tile_n:
        block_n = n                       # full-extent block: always layout-legal
        grid_n = 1
    else:
        block_n = ((tile_n + sub - 1) // sub) * sub   # multiple of sublane count
        grid_n = pl.cdiv(n, block_n)

    kernel = functools.partial(
        _ce_label_smooth_kernel,
        num_classes=num_classes,
        epsilon=float(epsilon),
        n_valid=n,
        block_n=block_n,
    )

    partials = pl.pallas_call(
        kernel,
        out_shape=jax.ShapeDtypeStruct((1, 128 * grid_n), jnp.float32),
        grid=(grid_n,),
        in_specs=[
            pl.BlockSpec((block_n, c), lambda i: (i, 0)),     # logits tile
            pl.BlockSpec((block_n, 1), lambda i: (i, 0)),     # targets tile
        ],
        out_specs=pl.BlockSpec((1, 128), lambda i: (0, i)),   # distinct lane-dense block per tile
        compiler_params=pltpu.CompilerParams(
            dimension_semantics=("parallel",),
        ),
    )(logits, targets2d)

    # each tile's partial is replicated across its 128 lanes; pick lane 0 and reduce
    total = jnp.sum(partials.reshape(grid_n, 128)[:, 0])
    return total / jnp.float32(n)


def _reference(logits, targets, num_classes, epsilon):
    log_probs = jax.nn.log_softmax(logits.astype(jnp.float32), axis=1)
    one_hot = jax.nn.one_hot(targets, num_classes, dtype=jnp.float32)
    smoothed = (1.0 - epsilon) * one_hot + epsilon / num_classes
    return (-smoothed * log_probs).mean(0).sum()


if __name__ == "__main__":
    EPSILON = 0.1
    key = jax.random.PRNGKey(0)

    # Case 1: toy shape matching the original module usage (single full-array tile)
    NUM_CLASSES, BATCH = 16, 8
    k1, k2, k3, k4, k5 = jax.random.split(key, 5)
    logits = jax.random.normal(k1, (BATCH, NUM_CLASSES), dtype=jnp.float32)
    targets = jax.random.randint(k2, (BATCH,), 0, NUM_CLASSES, dtype=jnp.int32)
    loss = jax.block_until_ready(
        cross_entropy_label_smooth(logits, targets, num_classes=NUM_CLASSES, epsilon=EPSILON)
    )
    ref = _reference(logits, targets, NUM_CLASSES, EPSILON)
    assert jnp.allclose(loss, ref, atol=1e-5, rtol=1e-5), (loss, ref)

    # Case 2: exercises the batch grid + remainder-tile masking (N=40, TILE_N=16 -> 3 tiles)
    N2, C2 = 40, 16
    logits2 = jax.random.normal(k3, (N2, C2), dtype=jnp.float32)
    targets2 = jax.random.randint(k4, (N2,), 0, C2, dtype=jnp.int32)
    loss2 = jax.block_until_ready(
        cross_entropy_label_smooth(logits2, targets2, num_classes=C2, epsilon=EPSILON, tile_n=16)
    )
    ref2 = _reference(logits2, targets2, C2, EPSILON)
    assert jnp.allclose(loss2, ref2, atol=1e-5, rtol=1e-5), (loss2, ref2)

    # Case 3: bf16 logits fed directly to the kernel (no wrapper upcast; f32 math inside)
    logits3 = jax.random.normal(k5, (24, NUM_CLASSES), dtype=jnp.float32).astype(jnp.bfloat16)
    targets3 = jax.random.randint(k2, (24,), 0, NUM_CLASSES, dtype=jnp.int32)
    loss3 = jax.block_until_ready(
        cross_entropy_label_smooth(logits3, targets3, num_classes=NUM_CLASSES, epsilon=EPSILON)
    )
    ref3 = _reference(logits3, targets3, NUM_CLASSES, EPSILON)
    assert jnp.allclose(loss3, ref3, atol=1e-4, rtol=1e-4), (loss3, ref3)

    print("KERNEL_OK")
</pallas_src>

<mosaic_0001>
module attributes {stable_mosaic.version = 11 : i64} {
  func.func @_ce_label_smooth_kernel(%arg0: i32, %arg1: memref<8x16xf32, #tpu.memory_space<vmem>>, %arg2: memref<8x1xi32, #tpu.memory_space<vmem>>, %arg3: memref<1x128xf32, #tpu.memory_space<vmem>>) attributes {dimension_semantics = [#tpu.dimension_semantics<parallel>], iteration_bounds = array<i64: 1>, scalar_prefetch = 0 : i64, scratch_operands = 0 : i64, tpu.core_type = #tpu.core_type<tc>, window_params = [{transform_indices = @transform_0, window_bounds = array<i64: 8, 16>}, {transform_indices = @transform_1, window_bounds = array<i64: 8, 1>}, {transform_indices = @transform_2, window_bounds = array<i64: 1, 128>}]} {
    %c0 = arith.constant 0 : index
    %c0_0 = arith.constant 0 : index
    %0 = vector.load %arg1[%c0, %c0_0] : memref<8x16xf32, #tpu.memory_space<vmem>>, vector<8x16xf32>
    %c0_1 = arith.constant 0 : index
    %c0_2 = arith.constant 0 : index
    %1 = vector.load %arg2[%c0_1, %c0_2] : memref<8x1xi32, #tpu.memory_space<vmem>>, vector<8x1xi32>
    %cst = arith.constant dense<0xFF800000> : vector<8xf32>
    %2 = vector.multi_reduction <maximumf>, %0, %cst [1] : vector<8x16xf32> to vector<8xf32>
    %3 = vector.shape_cast %2 : vector<8xf32> to vector<8x1xf32>
    %4 = vector.broadcast %3 : vector<8x1xf32> to vector<8x16xf32>
    %5 = arith.subf %0, %4 : vector<8x16xf32>
    %6 = math.exp %5 : vector<8x16xf32>
    %cst_3 = arith.constant dense<0.000000e+00> : vector<8xf32>
    %7 = vector.multi_reduction <add>, %6, %cst_3 [1] : vector<8x16xf32> to vector<8xf32>
    %8 = vector.shape_cast %7 : vector<8xf32> to vector<8x1xf32>
    %9 = math.log %8 : vector<8x1xf32>
    %10 = tpu.iota {dimensions = array<i32: 1>} : vector<8x16xi32>
    %11 = vector.broadcast %1 : vector<8x1xi32> to vector<8x16xi32>
    %12 = arith.cmpi eq, %10, %11 : vector<8x16xi32>
    %cst_4 = arith.constant 0.000000e+00 : f32
    %13 = vector.broadcast %cst_4 : f32 to vector<8x16xf32>
    %14 = arith.select %12, %5, %13 : vector<8x16xi1>, vector<8x16xf32>
    %cst_5 = arith.constant dense<0.000000e+00> : vector<8xf32>
    %15 = vector.multi_reduction <add>, %14, %cst_5 [1] : vector<8x16xf32> to vector<8xf32>
    %16 = vector.shape_cast %15 : vector<8xf32> to vector<8x1xf32>
    %cst_6 = arith.constant dense<0.000000e+00> : vector<8xf32>
    %17 = vector.multi_reduction <add>, %5, %cst_6 [1] : vector<8x16xf32> to vector<8xf32>
    %18 = vector.shape_cast %17 : vector<8xf32> to vector<8x1xf32>
    %19 = arith.subf %9, %16 : vector<8x1xf32>
    %cst_7 = arith.constant 0.899999976 : f32
    %20 = vector.broadcast %cst_7 : f32 to vector<8x1xf32>
    %21 = arith.mulf %20, %19 : vector<8x1xf32>
    %cst_8 = arith.constant 1.600000e+01 : f32
    %22 = vector.broadcast %cst_8 : f32 to vector<8x1xf32>
    %23 = arith.mulf %22, %9 : vector<8x1xf32>
    %24 = arith.subf %23, %18 : vector<8x1xf32>
    %cst_9 = arith.constant 6.250000e-03 : f32
    %25 = vector.broadcast %cst_9 : f32 to vector<8x1xf32>
    %26 = arith.mulf %25, %24 : vector<8x1xf32>
    %27 = arith.addf %21, %26 : vector<8x1xf32>
    %c8_i32 = arith.constant 8 : i32
    %28 = arith.muli %arg0, %c8_i32 : i32
    %29 = tpu.iota {dimensions = array<i32: 0>} : vector<8x1xi32>
    %30 = vector.broadcast %28 : i32 to vector<8x1xi32>
    %31 = arith.addi %30, %29 : vector<8x1xi32>
    %c8_i32_10 = arith.constant 8 : i32
    %32 = vector.broadcast %c8_i32_10 : i32 to vector<8x1xi32>
    %33 = arith.cmpi slt, %31, %32 : vector<8x1xi32>
    %cst_11 = arith.constant 0.000000e+00 : f32
    %34 = vector.broadcast %cst_11 : f32 to vector<8x1xf32>
    %35 = arith.select %33, %27, %34 : vector<8x1xi1>, vector<8x1xf32>
    %36 = vector.shape_cast %35 : vector<8x1xf32> to vector<1x8x1xf32>
    %cst_12 = arith.constant dense<0.000000e+00> : vector<1xf32>
    %37 = vector.multi_reduction <add>, %36, %cst_12 [1, 2] : vector<1x8x1xf32> to vector<1xf32>
    %38 = vector.shape_cast %37 : vector<1xf32> to vector<1x1x1xf32>
    %39 = vector.extract %38[0, 0, 0] : f32 from vector<1x1x1xf32>
    %40 = vector.broadcast %39 : f32 to vector<1x128xf32>
    %c0_13 = arith.constant 0 : index
    %c0_14 = arith.constant 0 : index
    %41 = vector.load %arg3[%c0_13, %c0_14] : memref<1x128xf32, #tpu.memory_space<vmem>>, vector<1x128xf32>
    tpu.vector_store %arg3[%c0_13, %c0_14], %40 {strides = array<i32>} : memref<1x128xf32, #tpu.memory_space<vmem>>, vector<1x128xf32>,
    return
  }
  func.func @transform_0(%arg0: i32) -> (i32, i32) {
    %c0_i32 = arith.constant 0 : i32
    %c0_i32_0 = arith.constant 0 : i32
    return %arg0, %c0_i32 : i32, i32
  }
  func.func @transform_1(%arg0: i32) -> (i32, i32) {
    %c0_i32 = arith.constant 0 : i32
    %c0_i32_0 = arith.constant 0 : i32
    return %arg0, %c0_i32 : i32, i32
  }
  func.func @transform_2(%arg0: i32) -> (i32, i32) {
    %c0_i32 = arith.constant 0 : i32
    %c0_i32_0 = arith.constant 0 : i32
    return %c0_i32, %arg0 : i32, i32
  }
}

</mosaic_0001>

<llo_original>
// kernel: tpu_custom_call.1
$region0: #{tpu_custom_call.1}
  #allocation0 [shape = 'u32[]', space=smem, size = 0x4, offset = 0x4, fixed_abs, tag = 'smem constant byte address 0x4 - core index']
  #allocation1 [shape = 'u32[72,128]{1,0:T(1,128)}', space=vmem, size = 0x9000, scoped, tag = 'internal scratch']
  %s0 = inlined_call_operand.vmem [shape: f32[8,16], index: 0, kind: input, shape index: {}]
  %s1 = inlined_call_operand.vmem [shape: s32[8,1], index: 1, kind: input, shape index: {}]
  %s2 = inlined_call_operand.hbm [shape: f32[1,128], index: 2, kind: output, shape index: {}]
  %s3 = sld [smem:[#allocation0]]
  $region18: #{tpu_custom_call.1} parent=0
    _
  %s5 = ssub.s32 1, %s3
  %s6 = scalar_select 0, %s5, %s3
  $region1: #{tpu_custom_call.1} parent=0
    #allocation2 [shape = 'u8[512]{0}', space=vmem, size = 0x400, scoped, tag = 'output window, operand 0, single buffered']
    #allocation3 [shape = 's32[1]{0}', space=sflag, size = 0x4, scoped, tag = 'scoped memory for tpu_custom_call.1']
    %7 = vsyncpa [#allocation3], 0
    // Predicated region
    $region2: #{tpu_custom_call.1} parent=1 // pred_check
      _
    $region3: #{tpu_custom_call.1} parent=1 // pred_check_branch
      %9 = sbr.rel (0) target = $region5
    $region4: #{tpu_custom_call.1} parent=1 // pred_region
      _
    $region5: #{tpu_custom_call.1} parent=1 // pred_fallthru
      _
    // Predicated region
    $region6: #{tpu_custom_call.1} parent=1 // pred_check
      _
    $region7: #{tpu_custom_call.1} parent=1 // pred_check_branch
      %11 = sbr.rel (0) target = $region9
    $region8: #{tpu_custom_call.1} parent=1 // pred_region
      _
    $region9: #{tpu_custom_call.1} parent=1 // pred_fallthru
      _
    %v12 = vld [vmem:[%s0] sm:$0xff]
    %v13 = vld [vmem:[%s1] sm:$0xff]
    %vm14 = vcmask 130048
    %v15 = vsel %vm14, %v12, -inf
    %16 = vmax.xlane.f32.xlu0 %v15
    %v17 = vpop.xlane.xlu0 %16
    %v18 = vsub.f32 %v12, %v17
    %v19 = vmul.f32 %v18, 1.442695
    %v20 = vpow.pop %v19
    %v21 = vsel %vm14, %v20, 0.0
    %22 = vadd.xlane.f32.xlu0 %v21
    %v23 = vpop.xlane.xlu0 %22
    %v24 = vlog2.pop %v23
    %v25 = vmul.f32 %v24, 0.6931472
    %v26 = vlaneseq
    %v27 = vand.u32 %v26, 127
    %28 = vset.pattern.permute.xlu0 0
    %29 = vperm.xlu0 %28, %v13
    %v30 = vpop.permute.xlu0 %29
    %vm31 = vcmp.eq.s32.totalorder %v27, %v30
    %v32 = vsel %vm31, %v18, 0.0
    %v33 = vsel %vm14, %v32, 0.0
    %34 = vadd.xlane.f32.xlu0 %v33
    %v35 = vpop.xlane.xlu0 %34
    %v36 = vsel %vm14, %v18, 0.0
    %37 = vadd.xlane.f32.xlu0 %v36
    %v38 = vpop.xlane.xlu0 %37
    %v39 = vsub.f32 %v25, %v35
    %v40 = vmul.f32 %v39, 0.9
    %v41 = vmul.f32 %v25, 16.0
    %v42 = vsub.f32 %v41, %v38
    %v43 = vmul.f32 %v42, 0.00625
    %v44 = vadd.f32 %v40, %v43
    %s45 = smul.u32 0, 8
    %v46 = vlaneseq
    %v47 = vshrl.u32 %v46, 7
    %v48 = vstv %s45
    %v49 = vadd.s32 %v48, %v47
    %vm50 = vcmp.lt.s32.totalorder %v49, 8
    %v51 = vsel %vm50, %v44, 0.0
    %vm52 = vcmask 7168
    %v53 = vsel %vm52, %v51, 0.0
    %54 = vadd.xlane.f32.xlu0 %v53
    %v55 = vpop.xlane.xlu0 %54
    %v56 = vrot.slane %v55, 4
    %v57 = vadd.f32 %v55, %v56
    %v58 = vrot.slane %v57, 2
    %v59 = vadd.f32 %v57, %v58
    %v60 = vrot.slane %v59, 1
    %v61 = vadd.f32 %v59, %v60
    %s62 = vtos %v61
    %v63 = vstv %s62
    %64 = vst [vmem:[#allocation2] sm:$0x1] %v63
    // Predicated region
    $region10: #{tpu_custom_call.1} parent=1 // pred_check
      _
    $region11: #{tpu_custom_call.1} parent=1 // pred_check_branch
      %66 = sbr.rel (0) target = $region13
    $region12: #{tpu_custom_call.1} parent=1 // pred_region
      %68 = vsyncadd [#allocation3], 0
      %s70 = sshll.u32 [#allocation2], 4
      %s71 = int_to_ptr.vmem [resolvable:$true] %s70
      %s72 = sshll.u32 %s2, 4
      %s73 = int_to_ptr.hbm [resolvable:$true] %s72
      %75 = dma.vmem_to_hbm [thread:$0]  %s71, 16, %s73, [#allocation3]
    $region13: #{tpu_custom_call.1} parent=1 // pred_fallthru
      _
    // Predicated region
    $region14: #{tpu_custom_call.1} parent=1 // pred_check
      _
    $region15: #{tpu_custom_call.1} parent=1 // pred_check_branch
      %77 = sbr.rel (0) target = $region17
    $region16: #{tpu_custom_call.1} parent=1 // pred_region
      %79 = dma.done [#allocation3], 16
    $region17: #{tpu_custom_call.1} parent=1 // pred_fallthru
      _
    %80 = vsyncpa [#allocation3], 1

</llo_original>
